<compile_context>
chip_gen: v5e
topology: v5e:2x2
jax: 0.10.0
libtpu: 0.0.40
codegen_flags: <defaults>
</compile_context>

<pallas_src>
import jax
import jax.numpy as jnp
from jax.experimental import pallas as pl
from jax.experimental.pallas import tpu as pltpu

EPS = 1e-5


def _round_up(x, m):
    return (x + m - 1) // m * m


def make_fnn_kernel(n_batch, d, in_features, out_features):
    """Single-block FNN forward, transposed ([channels, batch]) internally so
    the batch dimension sits on the 128-lane axis (lane-dense matmuls)."""
    inv_n = 1.0 / float(n_batch)

    def kernel(x_ref, w_ref, b_ref, o_ref):
        def linear(h_bf16, idx, k_dim):
            # w_ref is a lane-dense [d, 4*d] bf16 pack; static per-layer slice.
            # MXU matmul with f32 accumulation, bias add in f32.
            w = w_ref[:, idx * d: idx * d + k_dim]
            b = b_ref[:, idx: idx + 1]
            return jnp.dot(w, h_bf16, preferred_element_type=jnp.float32) + b

        def bn_relu(h):
            # BatchNorm1d (training mode, biased variance, gamma=1, beta=0)
            # over the batch (lane) axis; centered two-pass variance for
            # numerical robustness, then ReLU.  The batch axis is the logical
            # lane extent, so partial vregs never pollute the statistics.
            mean = jnp.sum(h, axis=1, keepdims=True) * inv_n
            diff = h - mean
            var = jnp.sum(diff * diff, axis=1, keepdims=True) * inv_n
            return jnp.maximum(diff * jax.lax.rsqrt(var + EPS), 0.0)

        # In-kernel transpose + bf16 cast of the input (folds the wrapper-side
        # pad/transpose/cast ops into the kernel).
        xt = x_ref[...].T.astype(jnp.bfloat16)          # [in_features, N]

        h = linear(xt, 0, in_features)                   # MLP linears[0]
        h = bn_relu(h)
        h = linear(h.astype(jnp.bfloat16), 1, d)         # MLP linears[1]
        h = bn_relu(h)
        h = linear(h.astype(jnp.bfloat16), 2, d)         # MLP linears[2]
        h = jnp.maximum(h, 0.0)                          # FNN: relu
        h = linear(h.astype(jnp.bfloat16), 3, d)         # FNN: linear2
        h = jnp.maximum(h, 0.0)                          # FNN: final relu

        # Transpose back and store directly as [N, out_features].
        o_ref[...] = h[:out_features, :].T

    return kernel


def pack_params(params, in_features, hidden, out_features):
    """Pack the 4 (W [out,in], b [out]) pairs into one lane-dense bf16 slab
    [d, 4*d] (layer index on the lane axis) and one f32 bias slab [d, 4].
    Zero padding is exact: padded channels are zero through bias/BN/ReLU and
    the following zero weight columns, so they never contaminate real ones."""
    d = _round_up(max(in_features, hidden, out_features), 16)
    n_lin = len(params)
    w_pack = jnp.zeros((d, n_lin * d), jnp.float32)
    b_pack = jnp.zeros((d, n_lin), jnp.float32)
    for i, (w, b) in enumerate(params):
        o, k = w.shape
        w_pack = w_pack.at[:o, i * d: i * d + k].set(w)
        b_pack = b_pack.at[:o, i].set(b)
    return w_pack.astype(jnp.bfloat16), b_pack, d


def _vmem_budget_bytes():
    """Generation-aware VMEM request: ~40 MiB on 64 MiB parts (v7x),
    ~96 MiB on 128 MiB parts (v5e/v6e)."""
    cap = 64 * 1024 * 1024
    try:
        info = pltpu.get_tpu_info()
        cap = int(getattr(info, "vmem_capacity_bytes", cap))
    except Exception:
        pass
    return max(min(cap - 24 * 1024 * 1024, (3 * cap) // 4), 16 * 1024 * 1024)


def fnn_forward(x, w_pack, b_pack, d, in_features, out_features):
    """x: [N, in_features] f32 -> [N, out_features] f32."""
    n = x.shape[0]
    vmem_budget = _vmem_budget_bytes()

    # Whole-batch-in-VMEM admission gate (BatchNorm1d needs full-batch stats).
    # Heuristic: ~12 live [d, n_lanes] f32 slabs + kernel IO buffers.
    # TODO(synk): replace with the tiled two-pass-BN grid (see header) for
    # node counts beyond this budget.
    n_lanes = _round_up(max(n, 1), 128)
    approx_live = n_lanes * d * 4 * 12 + x.size * 4 + n * out_features * 4
    assert approx_live <= vmem_budget, (
        "batch too large for the single-block FNN kernel; see TODO(synk)")

    return pl.pallas_call(
        make_fnn_kernel(n, d, in_features, out_features),
        out_shape=jax.ShapeDtypeStruct((n, out_features), jnp.float32),
        in_specs=[pl.BlockSpec(memory_space=pltpu.MemorySpace.VMEM)] * 3,
        out_specs=pl.BlockSpec(memory_space=pltpu.MemorySpace.VMEM),
        compiler_params=pltpu.CompilerParams(vmem_limit_bytes=vmem_budget),
    )(x, w_pack, b_pack)


def init_params(key, in_features, hidden, out_features):
    """PyTorch-style uniform(-1/sqrt(fan_in), 1/sqrt(fan_in)) init.
    Weights in PyTorch layout [out, in], biases [out]."""
    def linear(k, fan_in, fan_out):
        kw, kb = jax.random.split(k)
        bound = 1.0 / (float(fan_in) ** 0.5)
        w = jax.random.uniform(kw, (fan_out, fan_in), jnp.float32, -bound, bound)
        b = jax.random.uniform(kb, (fan_out,), jnp.float32, -bound, bound)
        return w, b

    k1, k2, k3, k4 = jax.random.split(key, 4)
    return [linear(k1, in_features, hidden),        # MLP linears[0]
            linear(k2, hidden, hidden),             # MLP linears[1]
            linear(k3, hidden, out_features),       # MLP linears[2]
            linear(k4, out_features, out_features)] # FNN linear2


def fnn_reference_f32(x, params):
    """Pure-f32 reference with exact module semantics."""
    (w1, b1), (w2, b2), (w3, b3), (w4, b4) = params

    def bn_relu(h):
        mean = jnp.mean(h, axis=0, keepdims=True)
        var = jnp.mean((h - mean) ** 2, axis=0, keepdims=True)
        return jnp.maximum((h - mean) * jax.lax.rsqrt(var + EPS), 0.0)

    h = bn_relu(x @ w1.T + b1)
    h = bn_relu(h @ w2.T + b2)
    h = h @ w3.T + b3
    h = jnp.maximum(h, 0.0)
    h = h @ w4.T + b4
    return jnp.maximum(h, 0.0)


def fnn_reference_mirror(x, params):
    """Reference mirroring kernel numerics (bf16 matmul operands, f32
    accumulation, centered biased variance) for a tight correctness check."""
    def dot_bf16(a, b):
        return jnp.dot(a.astype(jnp.bfloat16), b.astype(jnp.bfloat16),
                       preferred_element_type=jnp.float32)

    def bn_relu(h):
        mean = jnp.mean(h, axis=0, keepdims=True)
        var = jnp.mean((h - mean) ** 2, axis=0, keepdims=True)
        return jnp.maximum((h - mean) * jax.lax.rsqrt(var + EPS), 0.0)

    (w1, b1), (w2, b2), (w3, b3), (w4, b4) = params
    h = bn_relu(dot_bf16(x, w1.T) + b1)
    h = bn_relu(dot_bf16(h, w2.T) + b2)
    h = dot_bf16(h, w3.T) + b3
    h = jnp.maximum(h, 0.0)
    h = dot_bf16(h, w4.T) + b4
    return jnp.maximum(h, 0.0)


if __name__ == "__main__":
    # FNN(in_features=16, hidden=32, out_features=32, layer_num=3)
    # Batch of N=200 node embeddings (not a multiple of 128, so the partial
    # last vreg / masked-lane statistics path is exercised).
    N, IN_FEATURES, HIDDEN, OUT_FEATURES = 200, 16, 32, 32

    key = jax.random.PRNGKey(0)
    k_x, k_p = jax.random.split(key)
    x = jax.random.normal(k_x, (N, IN_FEATURES), jnp.float32)
    params = init_params(k_p, IN_FEATURES, HIDDEN, OUT_FEATURES)
    w_pack, b_pack, d = pack_params(params, IN_FEATURES, HIDDEN, OUT_FEATURES)

    out = fnn_forward(x, w_pack, b_pack, d, IN_FEATURES, OUT_FEATURES)
    out = jax.block_until_ready(out)
    assert out.shape == (N, OUT_FEATURES)

    # Tight check against a reference mirroring the kernel's bf16/f32 math.
    ref_mirror = fnn_reference_mirror(x, params)
    assert jnp.allclose(out, ref_mirror, atol=2e-3, rtol=2e-3), \
        "mismatch vs bf16-mirroring reference"

    # Loose sanity check against exact f32 module semantics (bf16 matmul
    # operands introduce ~1% level differences).
    ref_f32 = fnn_reference_f32(x, params)
    assert jnp.allclose(out, ref_f32, atol=1e-1, rtol=1e-1), \
        "mismatch vs f32 module-semantics reference"

    print("KERNEL_OK")
</pallas_src>

<mosaic_0001>
module attributes {stable_mosaic.version = 11 : i64} {
  func.func @kernel(%arg0: memref<200x16xf32, #tpu.memory_space<vmem>>, %arg1: memref<32x128xbf16, #tpu.memory_space<vmem>>, %arg2: memref<32x4xf32, #tpu.memory_space<vmem>>, %arg3: memref<200x32xf32, #tpu.memory_space<vmem>>) attributes {dimension_semantics = [], scalar_prefetch = 0 : i64, scratch_operands = 0 : i64, tpu.core_type = #tpu.core_type<tc>} {
    %c0 = arith.constant 0 : index
    %c0_0 = arith.constant 0 : index
    %0 = vector.load %arg0[%c0, %c0_0] : memref<200x16xf32, #tpu.memory_space<vmem>>, vector<200x16xf32>
    %1 = tpu.transpose %0, [1, 0] : vector<200x16xf32> -> vector<16x200xf32>
    %2 = arith.truncf %1 : vector<16x200xf32> to vector<16x200xbf16>
    %c0_1 = arith.constant 0 : index
    %c0_2 = arith.constant 0 : index
    %3 = vector.load %arg1[%c0_1, %c0_2] : memref<32x128xbf16, #tpu.memory_space<vmem>>, vector<32x16xbf16>
    %c0_3 = arith.constant 0 : index
    %c0_4 = arith.constant 0 : index
    %4 = vector.load %arg2[%c0_3, %c0_4] : memref<32x4xf32, #tpu.memory_space<vmem>>, vector<32x1xf32>
    %cst = arith.constant dense<0.000000e+00> : vector<32x200xf32>
    %5 = tpu.matmul %3, %2, %cst {dimension_numbers = #tpu.dot_dimension_numbers<[1], [0], [0], [1], [0, 0, 1, 1], [], []>} : vector<32x16xbf16>, vector<16x200xbf16>, vector<32x200xf32> -> vector<32x200xf32>
    %6 = vector.broadcast %4 : vector<32x1xf32> to vector<32x200xf32>
    %7 = arith.addf %5, %6 : vector<32x200xf32>
    %cst_5 = arith.constant dense<0.000000e+00> : vector<32xf32>
    %8 = vector.multi_reduction <add>, %7, %cst_5 [1] : vector<32x200xf32> to vector<32xf32>
    %9 = vector.shape_cast %8 : vector<32xf32> to vector<32x1xf32>
    %cst_6 = arith.constant 5.000000e-03 : f32
    %10 = vector.broadcast %cst_6 : f32 to vector<32x1xf32>
    %11 = arith.mulf %9, %10 : vector<32x1xf32>
    %12 = vector.broadcast %11 : vector<32x1xf32> to vector<32x200xf32>
    %13 = arith.subf %7, %12 : vector<32x200xf32>
    %14 = arith.mulf %13, %13 : vector<32x200xf32>
    %cst_7 = arith.constant dense<0.000000e+00> : vector<32xf32>
    %15 = vector.multi_reduction <add>, %14, %cst_7 [1] : vector<32x200xf32> to vector<32xf32>
    %16 = vector.shape_cast %15 : vector<32xf32> to vector<32x1xf32>
    %cst_8 = arith.constant 5.000000e-03 : f32
    %17 = vector.broadcast %cst_8 : f32 to vector<32x1xf32>
    %18 = arith.mulf %16, %17 : vector<32x1xf32>
    %cst_9 = arith.constant 9.99999974E-6 : f32
    %19 = vector.broadcast %cst_9 : f32 to vector<32x1xf32>
    %20 = arith.addf %18, %19 : vector<32x1xf32>
    %21 = math.rsqrt %20 : vector<32x1xf32>
    %22 = vector.broadcast %21 : vector<32x1xf32> to vector<32x200xf32>
    %23 = arith.mulf %13, %22 : vector<32x200xf32>
    %cst_10 = arith.constant 0.000000e+00 : f32
    %24 = vector.broadcast %cst_10 : f32 to vector<32x200xf32>
    %25 = arith.maximumf %23, %24 : vector<32x200xf32>
    %26 = arith.truncf %25 : vector<32x200xf32> to vector<32x200xbf16>
    %c0_11 = arith.constant 0 : index
    %c32 = arith.constant 32 : index
    %27 = vector.load %arg1[%c0_11, %c32] : memref<32x128xbf16, #tpu.memory_space<vmem>>, vector<32x32xbf16>
    %c0_12 = arith.constant 0 : index
    %c1 = arith.constant 1 : index
    %28 = vector.load %arg2[%c0_12, %c1] : memref<32x4xf32, #tpu.memory_space<vmem>>, vector<32x1xf32>
    %cst_13 = arith.constant dense<0.000000e+00> : vector<32x200xf32>
    %29 = tpu.matmul %27, %26, %cst_13 {dimension_numbers = #tpu.dot_dimension_numbers<[1], [0], [0], [1], [0, 0, 1, 1], [], []>} : vector<32x32xbf16>, vector<32x200xbf16>, vector<32x200xf32> -> vector<32x200xf32>
    %30 = vector.broadcast %28 : vector<32x1xf32> to vector<32x200xf32>
    %31 = arith.addf %29, %30 : vector<32x200xf32>
    %cst_14 = arith.constant dense<0.000000e+00> : vector<32xf32>
    %32 = vector.multi_reduction <add>, %31, %cst_14 [1] : vector<32x200xf32> to vector<32xf32>
    %33 = vector.shape_cast %32 : vector<32xf32> to vector<32x1xf32>
    %cst_15 = arith.constant 5.000000e-03 : f32
    %34 = vector.broadcast %cst_15 : f32 to vector<32x1xf32>
    %35 = arith.mulf %33, %34 : vector<32x1xf32>
    %36 = vector.broadcast %35 : vector<32x1xf32> to vector<32x200xf32>
    %37 = arith.subf %31, %36 : vector<32x200xf32>
    %38 = arith.mulf %37, %37 : vector<32x200xf32>
    %cst_16 = arith.constant dense<0.000000e+00> : vector<32xf32>
    %39 = vector.multi_reduction <add>, %38, %cst_16 [1] : vector<32x200xf32> to vector<32xf32>
    %40 = vector.shape_cast %39 : vector<32xf32> to vector<32x1xf32>
    %cst_17 = arith.constant 5.000000e-03 : f32
    %41 = vector.broadcast %cst_17 : f32 to vector<32x1xf32>
    %42 = arith.mulf %40, %41 : vector<32x1xf32>
    %cst_18 = arith.constant 9.99999974E-6 : f32
    %43 = vector.broadcast %cst_18 : f32 to vector<32x1xf32>
    %44 = arith.addf %42, %43 : vector<32x1xf32>
    %45 = math.rsqrt %44 : vector<32x1xf32>
    %46 = vector.broadcast %45 : vector<32x1xf32> to vector<32x200xf32>
    %47 = arith.mulf %37, %46 : vector<32x200xf32>
    %cst_19 = arith.constant 0.000000e+00 : f32
    %48 = vector.broadcast %cst_19 : f32 to vector<32x200xf32>
    %49 = arith.maximumf %47, %48 : vector<32x200xf32>
    %50 = arith.truncf %49 : vector<32x200xf32> to vector<32x200xbf16>
    %c0_20 = arith.constant 0 : index
    %c64 = arith.constant 64 : index
    %51 = vector.load %arg1[%c0_20, %c64] : memref<32x128xbf16, #tpu.memory_space<vmem>>, vector<32x32xbf16>
    %c0_21 = arith.constant 0 : index
    %c2 = arith.constant 2 : index
    %52 = vector.load %arg2[%c0_21, %c2] : memref<32x4xf32, #tpu.memory_space<vmem>>, vector<32x1xf32>
    %cst_22 = arith.constant dense<0.000000e+00> : vector<32x200xf32>
    %53 = tpu.matmul %51, %50, %cst_22 {dimension_numbers = #tpu.dot_dimension_numbers<[1], [0], [0], [1], [0, 0, 1, 1], [], []>} : vector<32x32xbf16>, vector<32x200xbf16>, vector<32x200xf32> -> vector<32x200xf32>
    %54 = vector.broadcast %52 : vector<32x1xf32> to vector<32x200xf32>
    %55 = arith.addf %53, %54 : vector<32x200xf32>
    %cst_23 = arith.constant 0.000000e+00 : f32
    %56 = vector.broadcast %cst_23 : f32 to vector<32x200xf32>
    %57 = arith.maximumf %55, %56 : vector<32x200xf32>
    %58 = arith.truncf %57 : vector<32x200xf32> to vector<32x200xbf16>
    %c0_24 = arith.constant 0 : index
    %c96 = arith.constant 96 : index
    %59 = vector.load %arg1[%c0_24, %c96] : memref<32x128xbf16, #tpu.memory_space<vmem>>, vector<32x32xbf16>
    %c0_25 = arith.constant 0 : index
    %c3 = arith.constant 3 : index
    %60 = vector.load %arg2[%c0_25, %c3] : memref<32x4xf32, #tpu.memory_space<vmem>>, vector<32x1xf32>
    %cst_26 = arith.constant dense<0.000000e+00> : vector<32x200xf32>
    %61 = tpu.matmul %59, %58, %cst_26 {dimension_numbers = #tpu.dot_dimension_numbers<[1], [0], [0], [1], [0, 0, 1, 1], [], []>} : vector<32x32xbf16>, vector<32x200xbf16>, vector<32x200xf32> -> vector<32x200xf32>
    %62 = vector.broadcast %60 : vector<32x1xf32> to vector<32x200xf32>
    %63 = arith.addf %61, %62 : vector<32x200xf32>
    %cst_27 = arith.constant 0.000000e+00 : f32
    %64 = vector.broadcast %cst_27 : f32 to vector<32x200xf32>
    %65 = arith.maximumf %63, %64 : vector<32x200xf32>
    %66 = tpu.transpose %65, [1, 0] : vector<32x200xf32> -> vector<200x32xf32>
    %c0_28 = arith.constant 0 : index
    %c0_29 = arith.constant 0 : index
    %67 = vector.load %arg3[%c0_28, %c0_29] : memref<200x32xf32, #tpu.memory_space<vmem>>, vector<200x32xf32>
    tpu.vector_store %arg3[%c0_28, %c0_29], %66 {strides = array<i32>} : memref<200x32xf32, #tpu.memory_space<vmem>>, vector<200x32xf32>,
    return
  }
}

</mosaic_0001>

<llo_original>
// kernel: tpu_custom_call.1
$region0: #{tpu_custom_call.1}
  #allocation0 [shape = 'u32[]', space=smem, size = 0x4, offset = 0x4, fixed_abs, tag = 'smem constant byte address 0x4 - core index']
  #allocation1 [shape = 'u32[72,128]{1,0:T(1,128)}', space=vmem, size = 0x9000, scoped, tag = 'internal scratch']
  %s0 = inlined_call_operand.vmem [shape: f32[200,16], index: 0, kind: input, shape index: {}]
  %s1 = inlined_call_operand.vmem [shape: bf16[32,128], index: 1, kind: input, shape index: {}]
  %s2 = inlined_call_operand.vmem [shape: f32[32,4], index: 2, kind: input, shape index: {}]
  %s3 = inlined_call_operand.vmem [shape: f32[200,32], index: 3, kind: output, shape index: {}]
  %s4 = sld [smem:[#allocation0]]
  $region22: #{tpu_custom_call.1} parent=0
    _
  %s6 = ssub.s32 1, %s4
  %s7 = scalar_select 0, %s6, %s4
  // Predicated region
  $region2: #{tpu_custom_call.1} parent=0 // pred_check
    _
  $region3: #{tpu_custom_call.1} parent=0 // pred_check_branch
    %9 = sbr.rel (0) target = $region5
  $region4: #{tpu_custom_call.1} parent=0 // pred_region
    _
  $region5: #{tpu_custom_call.1} parent=0 // pred_fallthru
    _
  // Predicated region
  $region6: #{tpu_custom_call.1} parent=0 // pred_check
    _
  $region7: #{tpu_custom_call.1} parent=0 // pred_check_branch
    %11 = sbr.rel (0) target = $region9
  $region8: #{tpu_custom_call.1} parent=0 // pred_region
    _
  $region9: #{tpu_custom_call.1} parent=0 // pred_fallthru
    _
  // Predicated region
  $region10: #{tpu_custom_call.1} parent=0 // pred_check
    _
  $region11: #{tpu_custom_call.1} parent=0 // pred_check_branch
    %13 = sbr.rel (0) target = $region13
  $region12: #{tpu_custom_call.1} parent=0 // pred_region
    _
  $region13: #{tpu_custom_call.1} parent=0 // pred_fallthru
    _
  %v15 = vld [vmem:[%s0] sm:$0xff]
  %v16 = vld [vmem:[%s0 + $0x8] sm:$0xff]
  %v17 = vld [vmem:[%s0 + $0x10] sm:$0xff]
  %v18 = vld [vmem:[%s0 + $0x18] sm:$0xff]
  %v19 = vld [vmem:[%s0 + $0x20] sm:$0xff]
  %v20 = vld [vmem:[%s0 + $0x28] sm:$0xff]
  %v21 = vld [vmem:[%s0 + $0x30] sm:$0xff]
  %v22 = vld [vmem:[%s0 + $0x38] sm:$0xff]
  %v23 = vld [vmem:[%s0 + $0x40] sm:$0xff]
  %v24 = vld [vmem:[%s0 + $0x48] sm:$0xff]
  %v25 = vld [vmem:[%s0 + $0x50] sm:$0xff]
  %v26 = vld [vmem:[%s0 + $0x58] sm:$0xff]
  %v27 = vld [vmem:[%s0 + $0x60] sm:$0xff]
  %v28 = vld [vmem:[%s0 + $0x68] sm:$0xff]
  %v29 = vld [vmem:[%s0 + $0x70] sm:$0xff]
  %v30 = vld [vmem:[%s0 + $0x78] sm:$0xff]
  %v31 = vld [vmem:[%s0 + $0x80] sm:$0xff]
  %v32 = vld [vmem:[%s0 + $0x88] sm:$0xff]
  %v33 = vld [vmem:[%s0 + $0x90] sm:$0xff]
  %v34 = vld [vmem:[%s0 + $0x98] sm:$0xff]
  %v35 = vld [vmem:[%s0 + $0xa0] sm:$0xff]
  %v36 = vld [vmem:[%s0 + $0xa8] sm:$0xff]
  %v37 = vld [vmem:[%s0 + $0xb0] sm:$0xff]
  %v38 = vld [vmem:[%s0 + $0xb8] sm:$0xff]
  %v39 = vld [vmem:[%s0 + $0xc0] sm:$0xff]
  %40 = vxpose.xlu0.b32.start [1/16] %v15, 128
  %41 = vxpose.xlu0.b32.cont [2/16] %v16, 128
  %42 = vxpose.xlu0.b32.cont [3/16] %v17, 128
  %43 = vxpose.xlu0.b32.cont [4/16] %v18, 128
  %44 = vxpose.xlu0.b32.cont [5/16] %v19, 128
  %45 = vxpose.xlu0.b32.cont [6/16] %v20, 128
  %46 = vxpose.xlu0.b32.cont [7/16] %v21, 128
  %47 = vxpose.xlu0.b32.cont [8/16] %v22, 128
  %48 = vxpose.xlu0.b32.cont [9/16] %v23, 128
  %49 = vxpose.xlu0.b32.cont [10/16] %v24, 128
  %50 = vxpose.xlu0.b32.cont [11/16] %v25, 128
  %51 = vxpose.xlu0.b32.cont [12/16] %v26, 128
  %52 = vxpose.xlu0.b32.cont [13/16] %v27, 128
  %53 = vxpose.xlu0.b32.cont [14/16] %v28, 128
  %54 = vxpose.xlu0.b32.cont [15/16] %v29, 128
  %55 = vxpose.xlu0.b32.end [16/16] %v30, 128
  %v56 = vpop.trf.xlu0
  %v57 = vpop.trf.xlu0
  %v58 = vpop.trf.xlu0
  %v59 = vpop.trf.xlu0
  %v60 = vpop.trf.xlu0
  %v61 = vpop.trf.xlu0
  %v62 = vpop.trf.xlu0
  %v63 = vpop.trf.xlu0
  %v64 = vpop.trf.xlu0
  %v65 = vpop.trf.xlu0
  %v66 = vpop.trf.xlu0
  %v67 = vpop.trf.xlu0
  %v68 = vpop.trf.xlu0
  %v69 = vpop.trf.xlu0
  %v70 = vpop.trf.xlu0
  %v71 = vpop.trf.xlu0
  %72 = vxpose.xlu0.b32.start [1/16] %v31, 128
  %73 = vxpose.xlu0.b32.cont [2/16] %v32, 128
  %74 = vxpose.xlu0.b32.cont [3/16] %v33, 128
  %75 = vxpose.xlu0.b32.cont [4/16] %v34, 128
  %76 = vxpose.xlu0.b32.cont [5/16] %v35, 128
  %77 = vxpose.xlu0.b32.cont [6/16] %v36, 128
  %78 = vxpose.xlu0.b32.cont [7/16] %v37, 128
  %79 = vxpose.xlu0.b32.cont [8/16] %v38, 128
  %80 = vxpose.xlu0.b32.cont [9/16] %v39, 128
  %81 = vxpose.xlu0.b32.cont [10/16] 0.0, 128
  %82 = vxpose.xlu0.b32.cont [11/16] 0.0, 128
  %83 = vxpose.xlu0.b32.cont [12/16] 0.0, 128
  %84 = vxpose.xlu0.b32.cont [13/16] 0.0, 128
  %85 = vxpose.xlu0.b32.cont [14/16] 0.0, 128
  %86 = vxpose.xlu0.b32.cont [15/16] 0.0, 128
  %87 = vxpose.xlu0.b32.end [16/16] 0.0, 128
  %v88 = vpop.trf.xlu0
  %v89 = vpop.trf.xlu0
  %v90 = vpop.trf.xlu0
  %v91 = vpop.trf.xlu0
  %v92 = vpop.trf.xlu0
  %v93 = vpop.trf.xlu0
  %v94 = vpop.trf.xlu0
  %v95 = vpop.trf.xlu0
  %v96 = vpop.trf.xlu0
  %v97 = vpop.trf.xlu0
  %v98 = vpop.trf.xlu0
  %v99 = vpop.trf.xlu0
  %v100 = vpop.trf.xlu0
  %v101 = vpop.trf.xlu0
  %v102 = vpop.trf.xlu0
  %v103 = vpop.trf.xlu0
  %v104 = vpack.c.bf16 %v57, %v56
  %v105 = vpack.c.bf16 %v89, %v88
  %v106 = vld [vmem:[%s1] sm:$0xf]
  %v107 = vld [vmem:[%s1 + $0x4] sm:$0xf]
  %v108 = vld [vmem:[%s1 + $0x8] sm:$0xf]
  %v109 = vld [vmem:[%s1 + $0xc] sm:$0xf]
  %v110 = vld [vmem:[%s2] sm:$0xff]
  %v111 = vld [vmem:[%s2 + $0x8] sm:$0xff]
  %v112 = vld [vmem:[%s2 + $0x10] sm:$0xff]
  %v113 = vld [vmem:[%s2 + $0x18] sm:$0xff]
  %115 = vset.pattern.permute.xlu0 0
  %116 = vperm.xlu0 %115, %v110
  %v117 = vpop.permute.xlu0 %116
  %120 = vset.pattern.permute.xlu0 0
  %121 = vperm.xlu0 %120, %v111
  %v122 = vpop.permute.xlu0 %121
  %125 = vset.pattern.permute.xlu0 0
  %126 = vperm.xlu0 %125, %v112
  %v127 = vpop.permute.xlu0 %126
  %130 = vset.pattern.permute.xlu0 0
  %131 = vperm.xlu0 %130, %v113
  %v132 = vpop.permute.xlu0 %131
  %v138 = vunpack.c.l.b16 %v106
  %v139 = vunpack.c.l.b16 %v107
  %v140 = vunpack.c.l.b16 %v108
  %v141 = vunpack.c.l.b16 %v109
  %v142 = vpack.c.b16 %v139, %v138
  %v143 = vpack.c.b16 %v141, %v140
  %vm144 = vcmask 130048
  %v146 = vsel %vm144, %v142, 0
  %v149 = vsel %vm144, %v143, 0
  %151 = vmatpush.bf16.msra.mxu0 0
  %152 = vmatpush.bf16.msra.mxu0 0
  %153 = vmatpush.bf16.msra.mxu0 0
  %154 = vmatpush.bf16.msra.mxu0 0
  %155 = vmatpush.bf16.msra.mxu0 0
  %156 = vmatpush.bf16.msra.mxu0 0
  %157 = vmatpush.bf16.msra.mxu0 0
  %158 = vmatpush.bf16.msra.mxu0 %v104
  %159 = vmatmul.bf16.gmra.mxu0 %v146
  %v160 = vpop.f32.mrf.mxu0
  %v161 = vadd.f32 %v117, %v160
  %v162 = vpop.f32.mrf.mxu0
  %v163 = vadd.f32 %v122, %v162
  %164 = vmatmul.bf16.gmra.mxu0 %v149
  %v165 = vpop.f32.mrf.mxu0
  %v166 = vadd.f32 %v127, %v165
  %v167 = vpop.f32.mrf.mxu0
  %v168 = vadd.f32 %v132, %v167
  %169 = vdwg.mxu0
  %170 = vmatpush.bf16.msra.mxu0 0
  %171 = vmatpush.bf16.msra.mxu0 0
  %172 = vmatpush.bf16.msra.mxu0 0
  %173 = vmatpush.bf16.msra.mxu0 0
  %174 = vmatpush.bf16.msra.mxu0 0
  %175 = vmatpush.bf16.msra.mxu0 0
  %176 = vmatpush.bf16.msra.mxu0 0
  %177 = vmatpush.bf16.msra.mxu0 %v105
  %178 = vmatmul.bf16.gmra.mxu0 %v146
  %v179 = vpop.f32.mrf.mxu0
  %v180 = vadd.f32 %v117, %v179
  %v181 = vpop.f32.mrf.mxu0
  %v182 = vadd.f32 %v122, %v181
  %183 = vmatmul.bf16.gmra.mxu0 %v149
  %v184 = vpop.f32.mrf.mxu0
  %v185 = vadd.f32 %v127, %v184
  %v186 = vpop.f32.mrf.mxu0
  %v187 = vadd.f32 %v132, %v186
  %188 = vdwg.mxu0
  %vm189 = vcmask 588800
  %v190 = vsel %vm189, %v180, 0.0
  %v191 = vadd.f32 %v161, %v190
  %192 = vadd.xlane.f32.xlu0 %v191
  %v193 = vpop.xlane.xlu0 %192
  %v194 = vsel %vm189, %v182, 0.0
  %v195 = vadd.f32 %v163, %v194
  %196 = vadd.xlane.f32.xlu0 %v195
  %v197 = vpop.xlane.xlu0 %196
  %v198 = vsel %vm189, %v185, 0.0
  %v199 = vadd.f32 %v166, %v198
  %200 = vadd.xlane.f32.xlu0 %v199
  %v201 = vpop.xlane.xlu0 %200
  %v202 = vsel %vm189, %v187, 0.0
  %v203 = vadd.f32 %v168, %v202
  %204 = vadd.xlane.f32.xlu0 %v203
  %v205 = vpop.xlane.xlu0 %204
  %v206 = vmul.f32 %v193, 0.005
  %v207 = vmul.f32 %v197, 0.005
  %v208 = vmul.f32 %v201, 0.005
  %v209 = vmul.f32 %v205, 0.005
  %v210 = vsub.f32 %v161, %v206
  %v211 = vsub.f32 %v180, %v206
  %v212 = vsub.f32 %v163, %v207
  %v213 = vsub.f32 %v182, %v207
  %v214 = vsub.f32 %v166, %v208
  %v215 = vsub.f32 %v185, %v208
  %v216 = vsub.f32 %v168, %v209
  %v217 = vsub.f32 %v187, %v209
  %v218 = vmul.f32 %v210, %v210
  %v219 = vmul.f32 %v211, %v211
  %v220 = vmul.f32 %v212, %v212
  %v221 = vmul.f32 %v213, %v213
  %v222 = vmul.f32 %v214, %v214
  %v223 = vmul.f32 %v215, %v215
  %v224 = vmul.f32 %v216, %v216
  %v225 = vmul.f32 %v217, %v217
  %v226 = vsel %vm189, %v219, 0.0
  %v227 = vadd.f32 %v218, %v226
  %228 = vadd.xlane.f32.xlu0 %v227
  %v229 = vpop.xlane.xlu0 %228
  %v230 = vsel %vm189, %v221, 0.0
  %v231 = vadd.f32 %v220, %v230
  %232 = vadd.xlane.f32.xlu0 %v231
  %v233 = vpop.xlane.xlu0 %232
  %v234 = vsel %vm189, %v223, 0.0
  %v235 = vadd.f32 %v222, %v234
  %236 = vadd.xlane.f32.xlu0 %v235
  %v237 = vpop.xlane.xlu0 %236
  %v238 = vsel %vm189, %v225, 0.0
  %v239 = vadd.f32 %v224, %v238
  %240 = vadd.xlane.f32.xlu0 %v239
  %v241 = vpop.xlane.xlu0 %240
  %v242 = vmul.f32 %v229, 0.005
  %v243 = vmul.f32 %v233, 0.005
  %v244 = vmul.f32 %v237, 0.005
  %v245 = vmul.f32 %v241, 0.005
  %v246 = vadd.f32 %v242, 1e-05
  %v247 = vadd.f32 %v243, 1e-05
  %v248 = vadd.f32 %v244, 1e-05
  %v249 = vadd.f32 %v245, 1e-05
  %v250 = vrsqrt.pop %v246
  %v251 = vmul.f32 %v250, %v246
  %v252 = vmul.f32 %v251, %v250
  %v253 = vmul.f32 0.5, %v252
  %v254 = vsub.f32 1.5, %v253
  %v255 = vmul.f32 %v250, %v254
  %vm256 = vweird.f32 %v246
  %vm257 = vweird.f32 %v250
  %vm258 = vmor %vm256, %vm257
  %v259 = vsel %vm258, %v250, %v255
  %v260 = vrsqrt.pop %v247
  %v261 = vmul.f32 %v260, %v247
  %v262 = vmul.f32 %v261, %v260
  %v263 = vmul.f32 0.5, %v262
  %v264 = vsub.f32 1.5, %v263
  %v265 = vmul.f32 %v260, %v264
  %vm266 = vweird.f32 %v247
  %vm267 = vweird.f32 %v260
  %vm268 = vmor %vm266, %vm267
  %v269 = vsel %vm268, %v260, %v265
  %v270 = vrsqrt.pop %v248
  %v271 = vmul.f32 %v270, %v248
  %v272 = vmul.f32 %v271, %v270
  %v273 = vmul.f32 0.5, %v272
  %v274 = vsub.f32 1.5, %v273
  %v275 = vmul.f32 %v270, %v274
  %vm276 = vweird.f32 %v248
  %vm277 = vweird.f32 %v270
  %vm278 = vmor %vm276, %vm277
  %v279 = vsel %vm278, %v270, %v275
  %v280 = vrsqrt.pop %v249
  %v281 = vmul.f32 %v280, %v249
  %v282 = vmul.f32 %v281, %v280
  %v283 = vmul.f32 0.5, %v282
  %v284 = vsub.f32 1.5, %v283
  %v285 = vmul.f32 %v280, %v284
  %vm286 = vweird.f32 %v249
  %vm287 = vweird.f32 %v280
  %vm288 = vmor %vm286, %vm287
  %v289 = vsel %vm288, %v280, %v285
  %v290 = vmul.f32 %v210, %v259
  %v291 = vmul.f32 %v211, %v259
  %v292 = vmul.f32 %v212, %v269
  %v293 = vmul.f32 %v213, %v269
  %v294 = vmul.f32 %v214, %v279
  %v295 = vmul.f32 %v215, %v279
  %v296 = vmul.f32 %v216, %v289
  %v297 = vmul.f32 %v217, %v289
  %v298 = vmax.f32 %v290, 0.0
  %v299 = vmax.f32 %v291, 0.0
  %v300 = vmax.f32 %v292, 0.0
  %v301 = vmax.f32 %v293, 0.0
  %v302 = vmax.f32 %v294, 0.0
  %v303 = vmax.f32 %v295, 0.0
  %v304 = vmax.f32 %v296, 0.0
  %v305 = vmax.f32 %v297, 0.0
  %v306 = vpack.c.bf16 %v300, %v298
  %v307 = vpack.c.bf16 %v301, %v299
  %v308 = vpack.c.bf16 %v304, %v302
  %v309 = vpack.c.bf16 %v305, %v303
  %310 = vset.pattern.permute.xlu0 1
  %311 = vperm.xlu0 %310, %v110
  %v312 = vpop.permute.xlu0 %311
  %314 = vset.pattern.permute.xlu0 1
  %315 = vperm.xlu0 %314, %v111
  %v316 = vpop.permute.xlu0 %315
  %318 = vset.pattern.permute.xlu0 1
  %319 = vperm.xlu0 %318, %v112
  %v320 = vpop.permute.xlu0 %319
  %322 = vset.pattern.permute.xlu0 1
  %323 = vperm.xlu0 %322, %v113
  %v324 = vpop.permute.xlu0 %323
  %326 = vrot.lane.b32.xlu0 %v142, 96
  %v327 = vpop.permute.xlu0 %326
  %328 = vrot.lane.b32.xlu0 %v143, 96
  %v329 = vpop.permute.xlu0 %328
  %vm330 = vcmask 261120
  %v332 = vsel %vm330, %v327, 0
  %v335 = vsel %vm330, %v329, 0
  %337 = vmatpush.bf16.msra.mxu0 0
  %338 = vmatpush.bf16.msra.mxu0 0
  %339 = vmatpush.bf16.msra.mxu0 0
  %340 = vmatpush.bf16.msra.mxu0 0
  %341 = vmatpush.bf16.msra.mxu0 0
  %342 = vmatpush.bf16.msra.mxu0 0
  %343 = vmatpush.bf16.msra.mxu0 %v308
  %344 = vmatpush.bf16.msra.mxu0 %v306
  %345 = vmatmul.bf16.gmra.mxu0 %v332
  %v346 = vpop.f32.mrf.mxu0
  %v347 = vadd.f32 %v312, %v346
  %v348 = vpop.f32.mrf.mxu0
  %v349 = vadd.f32 %v316, %v348
  %350 = vmatmul.bf16.gmra.mxu0 %v335
  %v351 = vpop.f32.mrf.mxu0
  %v352 = vadd.f32 %v320, %v351
  %v353 = vpop.f32.mrf.mxu0
  %v354 = vadd.f32 %v324, %v353
  %355 = vdwg.mxu0
  %356 = vmatpush.bf16.msra.mxu0 0
  %357 = vmatpush.bf16.msra.mxu0 0
  %358 = vmatpush.bf16.msra.mxu0 0
  %359 = vmatpush.bf16.msra.mxu0 0
  %360 = vmatpush.bf16.msra.mxu0 0
  %361 = vmatpush.bf16.msra.mxu0 0
  %362 = vmatpush.bf16.msra.mxu0 %v309
  %363 = vmatpush.bf16.msra.mxu0 %v307
  %364 = vmatmul.bf16.gmra.mxu0 %v332
  %v365 = vpop.f32.mrf.mxu0
  %v366 = vadd.f32 %v312, %v365
  %v367 = vpop.f32.mrf.mxu0
  %v368 = vadd.f32 %v316, %v367
  %369 = vmatmul.bf16.gmra.mxu0 %v335
  %v370 = vpop.f32.mrf.mxu0
  %v371 = vadd.f32 %v320, %v370
  %v372 = vpop.f32.mrf.mxu0
  %v373 = vadd.f32 %v324, %v372
  %374 = vdwg.mxu0
  %v375 = vsel %vm189, %v366, 0.0
  %v376 = vadd.f32 %v347, %v375
  %377 = vadd.xlane.f32.xlu0 %v376
  %v378 = vpop.xlane.xlu0 %377
  %v379 = vsel %vm189, %v368, 0.0
  %v380 = vadd.f32 %v349, %v379
  %381 = vadd.xlane.f32.xlu0 %v380
  %v382 = vpop.xlane.xlu0 %381
  %v383 = vsel %vm189, %v371, 0.0
  %v384 = vadd.f32 %v352, %v383
  %385 = vadd.xlane.f32.xlu0 %v384
  %v386 = vpop.xlane.xlu0 %385
  %v387 = vsel %vm189, %v373, 0.0
  %v388 = vadd.f32 %v354, %v387
  %389 = vadd.xlane.f32.xlu0 %v388
  %v390 = vpop.xlane.xlu0 %389
  %v391 = vmul.f32 %v378, 0.005
  %v392 = vmul.f32 %v382, 0.005
  %v393 = vmul.f32 %v386, 0.005
  %v394 = vmul.f32 %v390, 0.005
  %v395 = vsub.f32 %v347, %v391
  %v396 = vsub.f32 %v366, %v391
  %v397 = vsub.f32 %v349, %v392
  %v398 = vsub.f32 %v368, %v392
  %v399 = vsub.f32 %v352, %v393
  %v400 = vsub.f32 %v371, %v393
  %v401 = vsub.f32 %v354, %v394
  %v402 = vsub.f32 %v373, %v394
  %v403 = vmul.f32 %v395, %v395
  %v404 = vmul.f32 %v396, %v396
  %v405 = vmul.f32 %v397, %v397
  %v406 = vmul.f32 %v398, %v398
  %v407 = vmul.f32 %v399, %v399
  %v408 = vmul.f32 %v400, %v400
  %v409 = vmul.f32 %v401, %v401
  %v410 = vmul.f32 %v402, %v402
  %v411 = vsel %vm189, %v404, 0.0
  %v412 = vadd.f32 %v403, %v411
  %413 = vadd.xlane.f32.xlu0 %v412
  %v414 = vpop.xlane.xlu0 %413
  %v415 = vsel %vm189, %v406, 0.0
  %v416 = vadd.f32 %v405, %v415
  %417 = vadd.xlane.f32.xlu0 %v416
  %v418 = vpop.xlane.xlu0 %417
  %v419 = vsel %vm189, %v408, 0.0
  %v420 = vadd.f32 %v407, %v419
  %421 = vadd.xlane.f32.xlu0 %v420
  %v422 = vpop.xlane.xlu0 %421
  %v423 = vsel %vm189, %v410, 0.0
  %v424 = vadd.f32 %v409, %v423
  %425 = vadd.xlane.f32.xlu0 %v424
  %v426 = vpop.xlane.xlu0 %425
  %v427 = vmul.f32 %v414, 0.005
  %v428 = vmul.f32 %v418, 0.005
  %v429 = vmul.f32 %v422, 0.005
  %v430 = vmul.f32 %v426, 0.005
  %v431 = vadd.f32 %v427, 1e-05
  %v432 = vadd.f32 %v428, 1e-05
  %v433 = vadd.f32 %v429, 1e-05
  %v434 = vadd.f32 %v430, 1e-05
  %v435 = vrsqrt.pop %v431
  %v436 = vmul.f32 %v435, %v431
  %v437 = vmul.f32 %v436, %v435
  %v438 = vmul.f32 0.5, %v437
  %v439 = vsub.f32 1.5, %v438
  %v440 = vmul.f32 %v435, %v439
  %vm441 = vweird.f32 %v431
  %vm442 = vweird.f32 %v435
  %vm443 = vmor %vm441, %vm442
  %v444 = vsel %vm443, %v435, %v440
  %v445 = vrsqrt.pop %v432
  %v446 = vmul.f32 %v445, %v432
  %v447 = vmul.f32 %v446, %v445
  %v448 = vmul.f32 0.5, %v447
  %v449 = vsub.f32 1.5, %v448
  %v450 = vmul.f32 %v445, %v449
  %vm451 = vweird.f32 %v432
  %vm452 = vweird.f32 %v445
  %vm453 = vmor %vm451, %vm452
  %v454 = vsel %vm453, %v445, %v450
  %v455 = vrsqrt.pop %v433
  %v456 = vmul.f32 %v455, %v433
  %v457 = vmul.f32 %v456, %v455
  %v458 = vmul.f32 0.5, %v457
  %v459 = vsub.f32 1.5, %v458
  %v460 = vmul.f32 %v455, %v459
  %vm461 = vweird.f32 %v433
  %vm462 = vweird.f32 %v455
  %vm463 = vmor %vm461, %vm462
  %v464 = vsel %vm463, %v455, %v460
  %v465 = vrsqrt.pop %v434
  %v466 = vmul.f32 %v465, %v434
  %v467 = vmul.f32 %v466, %v465
  %v468 = vmul.f32 0.5, %v467
  %v469 = vsub.f32 1.5, %v468
  %v470 = vmul.f32 %v465, %v469
  %vm471 = vweird.f32 %v434
  %vm472 = vweird.f32 %v465
  %vm473 = vmor %vm471, %vm472
  %v474 = vsel %vm473, %v465, %v470
  %v475 = vmul.f32 %v395, %v444
  %v476 = vmul.f32 %v396, %v444
  %v477 = vmul.f32 %v397, %v454
  %v478 = vmul.f32 %v398, %v454
  %v479 = vmul.f32 %v399, %v464
  %v480 = vmul.f32 %v400, %v464
  %v481 = vmul.f32 %v401, %v474
  %v482 = vmul.f32 %v402, %v474
  %v483 = vmax.f32 %v475, 0.0
  %v484 = vmax.f32 %v476, 0.0
  %v485 = vmax.f32 %v477, 0.0
  %v486 = vmax.f32 %v478, 0.0
  %v487 = vmax.f32 %v479, 0.0
  %v488 = vmax.f32 %v480, 0.0
  %v489 = vmax.f32 %v481, 0.0
  %v490 = vmax.f32 %v482, 0.0
  %v491 = vpack.c.bf16 %v485, %v483
  %v492 = vpack.c.bf16 %v486, %v484
  %v493 = vpack.c.bf16 %v489, %v487
  %v494 = vpack.c.bf16 %v490, %v488
  %495 = vset.pattern.permute.xlu0 2
  %496 = vperm.xlu0 %495, %v110
  %v497 = vpop.permute.xlu0 %496
  %499 = vset.pattern.permute.xlu0 2
  %500 = vperm.xlu0 %499, %v111
  %v501 = vpop.permute.xlu0 %500
  %503 = vset.pattern.permute.xlu0 2
  %504 = vperm.xlu0 %503, %v112
  %v505 = vpop.permute.xlu0 %504
  %507 = vset.pattern.permute.xlu0 2
  %508 = vperm.xlu0 %507, %v113
  %v509 = vpop.permute.xlu0 %508
  %511 = vrot.lane.b32.xlu0 %v142, 64
  %v512 = vpop.permute.xlu0 %511
  %513 = vrot.lane.b32.xlu0 %v143, 64
  %v514 = vpop.permute.xlu0 %513
  %v516 = vsel %vm330, %v512, 0
  %v519 = vsel %vm330, %v514, 0
  %521 = vmatpush.bf16.msra.mxu0 0
  %522 = vmatpush.bf16.msra.mxu0 0
  %523 = vmatpush.bf16.msra.mxu0 0
  %524 = vmatpush.bf16.msra.mxu0 0
  %525 = vmatpush.bf16.msra.mxu0 0
  %526 = vmatpush.bf16.msra.mxu0 0
  %527 = vmatpush.bf16.msra.mxu0 %v493
  %528 = vmatpush.bf16.msra.mxu0 %v491
  %529 = vmatmul.bf16.gmra.mxu0 %v516
  %v530 = vpop.f32.mrf.mxu0
  %v531 = vadd.f32 %v497, %v530
  %v532 = vpop.f32.mrf.mxu0
  %v533 = vadd.f32 %v501, %v532
  %534 = vmatmul.bf16.gmra.mxu0 %v519
  %v535 = vpop.f32.mrf.mxu0
  %v536 = vadd.f32 %v505, %v535
  %v537 = vpop.f32.mrf.mxu0
  %v538 = vadd.f32 %v509, %v537
  %539 = vdwg.mxu0
  %540 = vmatpush.bf16.msra.mxu0 0
  %541 = vmatpush.bf16.msra.mxu0 0
  %542 = vmatpush.bf16.msra.mxu0 0
  %543 = vmatpush.bf16.msra.mxu0 0
  %544 = vmatpush.bf16.msra.mxu0 0
  %545 = vmatpush.bf16.msra.mxu0 0
  %546 = vmatpush.bf16.msra.mxu0 %v494
  %547 = vmatpush.bf16.msra.mxu0 %v492
  %548 = vmatmul.bf16.gmra.mxu0 %v516
  %v549 = vpop.f32.mrf.mxu0
  %v550 = vadd.f32 %v497, %v549
  %v551 = vpop.f32.mrf.mxu0
  %v552 = vadd.f32 %v501, %v551
  %553 = vmatmul.bf16.gmra.mxu0 %v519
  %v554 = vpop.f32.mrf.mxu0
  %v555 = vadd.f32 %v505, %v554
  %v556 = vpop.f32.mrf.mxu0
  %v557 = vadd.f32 %v509, %v556
  %558 = vdwg.mxu0
  %v559 = vmax.f32 %v531, 0.0
  %v560 = vmax.f32 %v550, 0.0
  %v561 = vmax.f32 %v533, 0.0
  %v562 = vmax.f32 %v552, 0.0
  %v563 = vmax.f32 %v536, 0.0
  %v564 = vmax.f32 %v555, 0.0
  %v565 = vmax.f32 %v538, 0.0
  %v566 = vmax.f32 %v557, 0.0
  %v567 = vpack.c.bf16 %v561, %v559
  %v568 = vpack.c.bf16 %v562, %v560
  %v569 = vpack.c.bf16 %v565, %v563
  %v570 = vpack.c.bf16 %v566, %v564
  %571 = vset.pattern.permute.xlu0 3
  %572 = vperm.xlu0 %571, %v110
  %v573 = vpop.permute.xlu0 %572
  %575 = vset.pattern.permute.xlu0 3
  %576 = vperm.xlu0 %575, %v111
  %v577 = vpop.permute.xlu0 %576
  %579 = vset.pattern.permute.xlu0 3
  %580 = vperm.xlu0 %579, %v112
  %v581 = vpop.permute.xlu0 %580
  %583 = vset.pattern.permute.xlu0 3
  %584 = vperm.xlu0 %583, %v113
  %v585 = vpop.permute.xlu0 %584
  %587 = vrot.lane.b32.xlu0 %v142, 32
  %v588 = vpop.permute.xlu0 %587
  %589 = vrot.lane.b32.xlu0 %v143, 32
  %v590 = vpop.permute.xlu0 %589
  %v592 = vsel %vm330, %v588, 0
  %v595 = vsel %vm330, %v590, 0
  %597 = vmatpush.bf16.msra.mxu0 0
  %598 = vmatpush.bf16.msra.mxu0 0
  %599 = vmatpush.bf16.msra.mxu0 0
  %600 = vmatpush.bf16.msra.mxu0 0
  %601 = vmatpush.bf16.msra.mxu0 0
  %602 = vmatpush.bf16.msra.mxu0 0
  %603 = vmatpush.bf16.msra.mxu0 %v569
  %604 = vmatpush.bf16.msra.mxu0 %v567
  %605 = vmatmul.bf16.gmra.mxu0 %v592
  %v606 = vpop.f32.mrf.mxu0
  %v607 = vadd.f32 %v573, %v606
  %v608 = vpop.f32.mrf.mxu0
  %v609 = vadd.f32 %v577, %v608
  %610 = vmatmul.bf16.gmra.mxu0 %v595
  %v611 = vpop.f32.mrf.mxu0
  %v612 = vadd.f32 %v581, %v611
  %v613 = vpop.f32.mrf.mxu0
  %v614 = vadd.f32 %v585, %v613
  %615 = vdwg.mxu0
  %616 = vmatpush.bf16.msra.mxu0 0
  %617 = vmatpush.bf16.msra.mxu0 0
  %618 = vmatpush.bf16.msra.mxu0 0
  %619 = vmatpush.bf16.msra.mxu0 0
  %620 = vmatpush.bf16.msra.mxu0 0
  %621 = vmatpush.bf16.msra.mxu0 0
  %622 = vmatpush.bf16.msra.mxu0 %v570
  %623 = vmatpush.bf16.msra.mxu0 %v568
  %624 = vmatmul.bf16.gmra.mxu0 %v592
  %v625 = vpop.f32.mrf.mxu0
  %v626 = vadd.f32 %v573, %v625
  %v627 = vpop.f32.mrf.mxu0
  %v628 = vadd.f32 %v577, %v627
  %629 = vmatmul.bf16.gmra.mxu0 %v595
  %v630 = vpop.f32.mrf.mxu0
  %v631 = vadd.f32 %v581, %v630
  %v632 = vpop.f32.mrf.mxu0
  %v633 = vadd.f32 %v585, %v632
  %634 = vdwg.mxu0
  %v635 = vmax.f32 %v607, 0.0
  %v636 = vmax.f32 %v626, 0.0
  %v637 = vmax.f32 %v609, 0.0
  %v638 = vmax.f32 %v628, 0.0
  %v639 = vmax.f32 %v612, 0.0
  %v640 = vmax.f32 %v631, 0.0
  %v641 = vmax.f32 %v614, 0.0
  %v642 = vmax.f32 %v633, 0.0
  %643 = vxpose.xlu0.b32.start [1/16] %v635, 128
  %644 = vxpose.xlu0.b32.cont [2/16] %v637, 128
  %645 = vxpose.xlu0.b32.cont [3/16] %v639, 128
  %646 = vxpose.xlu0.b32.cont [4/16] %v641, 128
  %647 = vxpose.xlu0.b32.cont [5/16] 0.0, 128
  %648 = vxpose.xlu0.b32.cont [6/16] 0.0, 128
  %649 = vxpose.xlu0.b32.cont [7/16] 0.0, 128
  %650 = vxpose.xlu0.b32.cont [8/16] 0.0, 128
  %651 = vxpose.xlu0.b32.cont [9/16] 0.0, 128
  %652 = vxpose.xlu0.b32.cont [10/16] 0.0, 128
  %653 = vxpose.xlu0.b32.cont [11/16] 0.0, 128
  %654 = vxpose.xlu0.b32.cont [12/16] 0.0, 128
  %655 = vxpose.xlu0.b32.cont [13/16] 0.0, 128
  %656 = vxpose.xlu0.b32.cont [14/16] 0.0, 128
  %657 = vxpose.xlu0.b32.cont [15/16] 0.0, 128
  %658 = vxpose.xlu0.b32.end [16/16] 0.0, 128
  %v659 = vpop.trf.xlu0
  %v660 = vpop.trf.xlu0
  %v661 = vpop.trf.xlu0
  %v662 = vpop.trf.xlu0
  %v663 = vpop.trf.xlu0
  %v664 = vpop.trf.xlu0
  %v665 = vpop.trf.xlu0
  %v666 = vpop.trf.xlu0
  %v667 = vpop.trf.xlu0
  %v668 = vpop.trf.xlu0
  %v669 = vpop.trf.xlu0
  %v670 = vpop.trf.xlu0
  %v671 = vpop.trf.xlu0
  %v672 = vpop.trf.xlu0
  %v673 = vpop.trf.xlu0
  %v674 = vpop.trf.xlu0
  %675 = vxpose.xlu0.b32.start [1/16] %v636, 128
  %676 = vxpose.xlu0.b32.cont [2/16] %v638, 128
  %677 = vxpose.xlu0.b32.cont [3/16] %v640, 128
  %678 = vxpose.xlu0.b32.cont [4/16] %v642, 128
  %679 = vxpose.xlu0.b32.cont [5/16] 0.0, 128
  %680 = vxpose.xlu0.b32.cont [6/16] 0.0, 128
  %681 = vxpose.xlu0.b32.cont [7/16] 0.0, 128
  %682 = vxpose.xlu0.b32.cont [8/16] 0.0, 128
  %683 = vxpose.xlu0.b32.cont [9/16] 0.0, 128
  %684 = vxpose.xlu0.b32.cont [10/16] 0.0, 128
  %685 = vxpose.xlu0.b32.cont [11/16] 0.0, 128
  %686 = vxpose.xlu0.b32.cont [12/16] 0.0, 128
  %687 = vxpose.xlu0.b32.cont [13/16] 0.0, 128
  %688 = vxpose.xlu0.b32.cont [14/16] 0.0, 128
  %689 = vxpose.xlu0.b32.cont [15/16] 0.0, 128
  %690 = vxpose.xlu0.b32.end [16/16] 0.0, 128
  %v691 = vpop.trf.xlu0
  %v692 = vpop.trf.xlu0
  %v693 = vpop.trf.xlu0
  %v694 = vpop.trf.xlu0
  %v695 = vpop.trf.xlu0
  %v696 = vpop.trf.xlu0
  %v697 = vpop.trf.xlu0
  %v698 = vpop.trf.xlu0
  %v699 = vpop.trf.xlu0
  %v700 = vpop.trf.xlu0
  %v701 = vpop.trf.xlu0
  %v702 = vpop.trf.xlu0
  %v703 = vpop.trf.xlu0
  %v704 = vpop.trf.xlu0
  %v705 = vpop.trf.xlu0
  %v706 = vpop.trf.xlu0
  %707 = vst.msk [vmem:[%s3] sm:$0xff] %vm330, %v659
  %708 = vst.msk [vmem:[%s3 + $0x8] sm:$0xff] %vm330, %v660
  %709 = vst.msk [vmem:[%s3 + $0x10] sm:$0xff] %vm330, %v661
  %710 = vst.msk [vmem:[%s3 + $0x18] sm:$0xff] %vm330, %v662
  %711 = vst.msk [vmem:[%s3 + $0x20] sm:$0xff] %vm330, %v663
  %712 = vst.msk [vmem:[%s3 + $0x28] sm:$0xff] %vm330, %v664
  %713 = vst.msk [vmem:[%s3 + $0x30] sm:$0xff] %vm330, %v665
  %714 = vst.msk [vmem:[%s3 + $0x38] sm:$0xff] %vm330, %v666
  %715 = vst.msk [vmem:[%s3 + $0x40] sm:$0xff] %vm330, %v667
  %716 = vst.msk [vmem:[%s3 + $0x48] sm:$0xff] %vm330, %v668
  %717 = vst.msk [vmem:[%s3 + $0x50] sm:$0xff] %vm330, %v669
  %718 = vst.msk [vmem:[%s3 + $0x58] sm:$0xff] %vm330, %v670
  %719 = vst.msk [vmem:[%s3 + $0x60] sm:$0xff] %vm330, %v671
  %720 = vst.msk [vmem:[%s3 + $0x68] sm:$0xff] %vm330, %v672
  %721 = vst.msk [vmem:[%s3 + $0x70] sm:$0xff] %vm330, %v673
  %722 = vst.msk [vmem:[%s3 + $0x78] sm:$0xff] %vm330, %v674
  %723 = vst.msk [vmem:[%s3 + $0x80] sm:$0xff] %vm330, %v691
  %724 = vst.msk [vmem:[%s3 + $0x88] sm:$0xff] %vm330, %v692
  %725 = vst.msk [vmem:[%s3 + $0x90] sm:$0xff] %vm330, %v693
  %726 = vst.msk [vmem:[%s3 + $0x98] sm:$0xff] %vm330, %v694
  %727 = vst.msk [vmem:[%s3 + $0xa0] sm:$0xff] %vm330, %v695
  %728 = vst.msk [vmem:[%s3 + $0xa8] sm:$0xff] %vm330, %v696
  %729 = vst.msk [vmem:[%s3 + $0xb0] sm:$0xff] %vm330, %v697
  %730 = vst.msk [vmem:[%s3 + $0xb8] sm:$0xff] %vm330, %v698
  %731 = vst.msk [vmem:[%s3 + $0xc0] sm:$0xff] %vm330, %v699
  // Predicated region
  $region14: #{tpu_custom_call.1} parent=0 // pred_check
    _
  $region15: #{tpu_custom_call.1} parent=0 // pred_check_branch
    %733 = sbr.rel (0) target = $region17
  $region16: #{tpu_custom_call.1} parent=0 // pred_region
    _
  $region17: #{tpu_custom_call.1} parent=0 // pred_fallthru
    _
  // Predicated region
  $region18: #{tpu_custom_call.1} parent=0 // pred_check
    _
  $region19: #{tpu_custom_call.1} parent=0 // pred_check_branch
    %735 = sbr.rel (0) target = $region21
  $region20: #{tpu_custom_call.1} parent=0 // pred_region
    _
  $region21: #{tpu_custom_call.1} parent=0 // pred_fallthru
    _

</llo_original>
